<compile_context>
chip_gen: v7x
topology: tpu7x:2x2x1
jax: 0.10.0
libtpu: 0.0.40
codegen_flags: <defaults>
</compile_context>

<pallas_src>
import functools

import jax
import jax.numpy as jnp
from jax import lax
from jax.experimental import pallas as pl
from jax.experimental.pallas import tpu as pltpu

LANES = 128
SUBLANES = 8
TILE_BYTES_PER_INPUT = 4 * 1024 * 1024   # per-input, per-pipeline-buffer DMA tile
CHUNK_ROWS = 1024                        # in-kernel accumulation sub-chunk (rows)
VMEM_LIMIT_BYTES = 32 * 1024 * 1024      # 2 inputs x 2 bufs x 4 MiB + scratch << 32 MiB


def _loss_sums_kernel(p_ref, t_ref, sse_ref, sae_ref, *,
                      steps, tile_rows, total_rows, full_blocks, needs_mask):
    """Accumulates per-shard (8,128) partial sums of (p-t)^2 and |p-t|."""
    s = pl.program_id(0)                 # shard ("parallel") axis
    t = pl.program_id(1)                 # reduction ("arbitrary") axis

    @pl.when(t == 0)
    def _():
        sse_ref[...] = jnp.zeros_like(sse_ref)
        sae_ref[...] = jnp.zeros_like(sae_ref)

    logical_block = s * steps + t        # un-clamped logical row-tile index
    block_row0 = logical_block * tile_rows

    def accumulate(masked):
        def partial_sums(r0, nrows):
            # In-kernel cast keeps bf16/int support without a wrapper HBM copy
            # (also required on v5e, which has no bf16 VPU).
            p = p_ref[pl.ds(r0, nrows), :].astype(jnp.float32)
            q = t_ref[pl.ds(r0, nrows), :].astype(jnp.float32)
            d = p - q
            if masked:
                # Rows at/after `total_rows` hold unspecified data (partial or
                # clamped edge DMA) -> zero them before accumulating.
                row = lax.broadcasted_iota(jnp.int32, (nrows, LANES), 0)
                d = jnp.where(block_row0 + r0 + row < total_rows, d, 0.0)
            # (nrows,128) -> (nrows//8, 8, 128): vreg-aligned view, so the
            # axis-0 sums are pure VPU adds into one vreg per statistic.
            d3 = d.reshape(-1, SUBLANES, LANES)
            return jnp.sum(d3 * d3, axis=0), jnp.sum(jnp.abs(d3), axis=0)

        num_chunks = tile_rows // CHUNK_ROWS       # static
        rem_rows = tile_rows - num_chunks * CHUNK_ROWS  # static, multiple of 8

        sse = jnp.zeros((SUBLANES, LANES), jnp.float32)
        sae = jnp.zeros((SUBLANES, LANES), jnp.float32)

        if num_chunks > 0:
            def body(c, carry):
                acc_sse, acc_sae = carry
                r0 = pl.multiple_of(c * CHUNK_ROWS, CHUNK_ROWS)
                ds, da = partial_sums(r0, CHUNK_ROWS)
                return acc_sse + ds, acc_sae + da
            sse, sae = lax.fori_loop(0, num_chunks, body, (sse, sae))
        if rem_rows > 0:
            ds, da = partial_sums(num_chunks * CHUNK_ROWS, rem_rows)
            sse, sae = sse + ds, sae + da

        sse_ref[...] += sse
        sae_ref[...] += sae

    if needs_mask:
        # Fast unmasked path for fully-valid tiles; masked path only for the
        # trailing partial / grid-overhang tiles (compile-time specialized).
        @pl.when(logical_block < full_blocks)
        def _():
            accumulate(False)

        @pl.when(logical_block >= full_blocks)
        def _():
            accumulate(True)
    else:
        accumulate(False)


def _loss_sums(pred, target):
    """One HBM pass -> (sum_squared_error, sum_absolute_error, n_elements)."""
    n_elem = pred.size                           # static under jit

    # TODO(synk): element counts that are not a multiple of 8*128 fall back to
    # a fused XLA reduction (still single-pass) instead of the Pallas kernel.
    if n_elem % (SUBLANES * LANES) != 0:
        d = pred.astype(jnp.float32) - target.astype(jnp.float32)
        return jnp.sum(d * d), jnp.sum(jnp.abs(d)), n_elem

    rows = n_elem // LANES                       # multiple of 8 by construction
    itemsize = max(jnp.dtype(pred.dtype).itemsize, jnp.dtype(target.dtype).itemsize)
    max_tile_rows = max(CHUNK_ROWS,
                        (TILE_BYTES_PER_INPUT // (LANES * itemsize))
                        // CHUNK_ROWS * CHUNK_ROWS)
    tile_rows = rows if rows <= max_tile_rows else max_tile_rows

    num_blocks = -(-rows // tile_rows)           # row tiles (last may be partial)
    full_blocks = rows // tile_rows              # fully-valid row tiles
    num_shards = 2 if num_blocks >= 2 else 1     # "parallel" axis (both TCs on v7x)
    steps = -(-num_blocks // num_shards)
    needs_mask = (num_shards * steps) > full_blocks
    last_block = num_blocks - 1

    # Lane-dense views; no pad / no slice -> each input read from HBM once.
    p2 = pred.reshape(rows, LANES)
    t2 = target.reshape(rows, LANES)

    def in_map(s, t):
        # Clamp so grid points past the last real tile re-fetch (and fully
        # mask) the final valid tile instead of issuing an OOB-start DMA.
        return (jnp.minimum(s * steps + t, last_block), 0)

    out_map = lambda s, t: (s, 0)                # per-shard resident accumulator

    kernel = functools.partial(
        _loss_sums_kernel, steps=steps, tile_rows=tile_rows,
        total_rows=rows, full_blocks=full_blocks, needs_mask=needs_mask)

    bytes_accessed = (p2.size * jnp.dtype(p2.dtype).itemsize
                      + t2.size * jnp.dtype(t2.dtype).itemsize
                      + 2 * num_shards * SUBLANES * LANES * 4)
    cost = pl.CostEstimate(flops=5 * n_elem, transcendentals=0,
                           bytes_accessed=bytes_accessed)

    sse_parts, sae_parts = pl.pallas_call(
        kernel,
        out_shape=(
            jax.ShapeDtypeStruct((num_shards * SUBLANES, LANES), jnp.float32),
            jax.ShapeDtypeStruct((num_shards * SUBLANES, LANES), jnp.float32),
        ),
        grid_spec=pltpu.PrefetchScalarGridSpec(
            num_scalar_prefetch=0,
            grid=(num_shards, steps),
            in_specs=[
                pl.BlockSpec((tile_rows, LANES), in_map),
                pl.BlockSpec((tile_rows, LANES), in_map),
            ],
            out_specs=[
                pl.BlockSpec((SUBLANES, LANES), out_map),
                pl.BlockSpec((SUBLANES, LANES), out_map),
            ],
        ),
        compiler_params=pltpu.CompilerParams(
            dimension_semantics=("parallel", "arbitrary"),
            vmem_limit_bytes=VMEM_LIMIT_BYTES,
        ),
        cost_estimate=cost,
    )(p2, t2)

    # One final tiny cross-lane/sublane reduction over (num_shards*8, 128).
    return jnp.sum(sse_parts), jnp.sum(sae_parts), n_elem


# Loss functions consume the shared per-call statistics so the HBM stream runs
# exactly once even when several losses are combined.  (The reciprocal of the
# static element count is computed in double precision at trace time.)
def mse_loss(stats):
    sse, _sae, n = stats
    return sse * (1.0 / n)


def l1_loss(stats):
    _sse, sae, n = stats
    return sae * (1.0 / n)


class CombinedLoss:
    """JAX/Pallas port of the PyTorch CombinedLoss module (same forward semantics)."""

    def __init__(self, weights, loss_functions):
        self.weights = tuple(weights)
        self.loss_functions = tuple(loss_functions)

        def _forward(pred, target):
            stats = _loss_sums(pred, target)     # single Pallas pass: SSE and SAE
            total_loss = jnp.float32(0.0)
            for weight, loss_fn in zip(self.weights, self.loss_functions):
                # Reference code overwrites (does not accumulate) -- reproduced exactly.
                total_loss = weight * loss_fn(stats)
            return total_loss

        # One jitted program: Pallas stats pass + tiny reduce/weight epilogue.
        self._forward = jax.jit(_forward)

    def __call__(self, pred, target):
        return self._forward(pred, target)


if __name__ == "__main__":
    key = jax.random.PRNGKey(0)
    k1, k2 = jax.random.split(key)
    # NCHW inputs, small shapes: batch=2, channels=4, spatial=16.
    pred = jax.random.normal(k1, (2, 4, 16, 16), dtype=jnp.float32)
    target = jax.random.normal(k2, (2, 4, 16, 16), dtype=jnp.float32)

    criterion = CombinedLoss(weights=(0.7, 0.3), loss_functions=[mse_loss, l1_loss])
    loss = jax.block_until_ready(criterion(pred, target))

    # Sanity check against pure-JAX reference of the same (quirky) forward.
    ref = 0.3 * jnp.mean(jnp.abs(pred - target))  # last (weight, loss_fn) pair wins
    assert jnp.allclose(loss, ref, rtol=1e-5, atol=1e-6), (loss, ref)

    print("KERNEL_OK")
</pallas_src>

<mosaic_0001>
module attributes {stable_mosaic.version = 11 : i64} {
  func.func @_loss_sums_kernel(%arg0: i32, %arg1: i32, %arg2: memref<16x128xf32, #tpu.memory_space<vmem>>, %arg3: memref<16x128xf32, #tpu.memory_space<vmem>>, %arg4: memref<8x128xf32, #tpu.memory_space<vmem>>, %arg5: memref<8x128xf32, #tpu.memory_space<vmem>>) attributes {dimension_semantics = [#tpu.dimension_semantics<parallel>, #tpu.dimension_semantics<arbitrary>], iteration_bounds = array<i64: 1, 1>, scalar_prefetch = 0 : i64, scratch_operands = 0 : i64, tpu.core_type = #tpu.core_type<tc>, window_params = [{transform_indices = @transform_0, window_bounds = array<i64: 16, 128>}, {transform_indices = @transform_1, window_bounds = array<i64: 16, 128>}, {transform_indices = @transform_2, window_bounds = array<i64: 8, 128>}, {transform_indices = @transform_3, window_bounds = array<i64: 8, 128>}]} {
    %c0_i32 = arith.constant 0 : i32
    %0 = arith.cmpi eq, %arg1, %c0_i32 : i32
    %1 = arith.extui %0 : i1 to i32
    %c0_i32_0 = arith.constant 0 : i32
    %2 = arith.cmpi ne, %1, %c0_i32_0 : i32
    scf.if %2 {
      %cst_15 = arith.constant 0.000000e+00 : f32
      %21 = vector.broadcast %cst_15 : f32 to vector<8x128xf32>
      %c0_16 = arith.constant 0 : index
      %c0_17 = arith.constant 0 : index
      %22 = vector.load %arg4[%c0_16, %c0_17] : memref<8x128xf32, #tpu.memory_space<vmem>>, vector<8x128xf32>
      tpu.vector_store %arg4[%c0_16, %c0_17], %21 {strides = array<i32>} : memref<8x128xf32, #tpu.memory_space<vmem>>, vector<8x128xf32>,
      %cst_18 = arith.constant 0.000000e+00 : f32
      %23 = vector.broadcast %cst_18 : f32 to vector<8x128xf32>
      %c0_19 = arith.constant 0 : index
      %c0_20 = arith.constant 0 : index
      %24 = vector.load %arg5[%c0_19, %c0_20] : memref<8x128xf32, #tpu.memory_space<vmem>>, vector<8x128xf32>
      tpu.vector_store %arg5[%c0_19, %c0_20], %23 {strides = array<i32>} : memref<8x128xf32, #tpu.memory_space<vmem>>, vector<8x128xf32>,
    } else {
    }
    %cst = arith.constant 0.000000e+00 : f32
    %3 = vector.broadcast %cst : f32 to vector<8x128xf32>
    %cst_1 = arith.constant 0.000000e+00 : f32
    %4 = vector.broadcast %cst_1 : f32 to vector<8x128xf32>
    %c0 = arith.constant 0 : index
    %c0_2 = arith.constant 0 : index
    %5 = vector.load %arg2[%c0, %c0_2] : memref<16x128xf32, #tpu.memory_space<vmem>>, vector<16x128xf32>
    %c0_3 = arith.constant 0 : index
    %c0_4 = arith.constant 0 : index
    %6 = vector.load %arg3[%c0_3, %c0_4] : memref<16x128xf32, #tpu.memory_space<vmem>>, vector<16x128xf32>
    %7 = arith.subf %5, %6 : vector<16x128xf32>
    %8 = vector.shape_cast %7 : vector<16x128xf32> to vector<2x8x128xf32>
    %9 = arith.mulf %8, %8 : vector<2x8x128xf32>
    %cst_5 = arith.constant dense<0.000000e+00> : vector<8x128xf32>
    %10 = vector.multi_reduction <add>, %9, %cst_5 [0] : vector<2x8x128xf32> to vector<8x128xf32>
    %11 = math.absf %8 : vector<2x8x128xf32>
    %cst_6 = arith.constant dense<0.000000e+00> : vector<8x128xf32>
    %12 = vector.multi_reduction <add>, %11, %cst_6 [0] : vector<2x8x128xf32> to vector<8x128xf32>
    %13 = arith.addf %3, %10 : vector<8x128xf32>
    %14 = arith.addf %4, %12 : vector<8x128xf32>
    %c0_7 = arith.constant 0 : index
    %c0_8 = arith.constant 0 : index
    %15 = vector.load %arg4[%c0_7, %c0_8] : memref<8x128xf32, #tpu.memory_space<vmem>>, vector<8x128xf32>
    %16 = arith.addf %15, %13 : vector<8x128xf32>
    %c0_9 = arith.constant 0 : index
    %c0_10 = arith.constant 0 : index
    %17 = vector.load %arg4[%c0_9, %c0_10] : memref<8x128xf32, #tpu.memory_space<vmem>>, vector<8x128xf32>
    tpu.vector_store %arg4[%c0_9, %c0_10], %16 {strides = array<i32>} : memref<8x128xf32, #tpu.memory_space<vmem>>, vector<8x128xf32>,
    %c0_11 = arith.constant 0 : index
    %c0_12 = arith.constant 0 : index
    %18 = vector.load %arg5[%c0_11, %c0_12] : memref<8x128xf32, #tpu.memory_space<vmem>>, vector<8x128xf32>
    %19 = arith.addf %18, %14 : vector<8x128xf32>
    %c0_13 = arith.constant 0 : index
    %c0_14 = arith.constant 0 : index
    %20 = vector.load %arg5[%c0_13, %c0_14] : memref<8x128xf32, #tpu.memory_space<vmem>>, vector<8x128xf32>
    tpu.vector_store %arg5[%c0_13, %c0_14], %19 {strides = array<i32>} : memref<8x128xf32, #tpu.memory_space<vmem>>, vector<8x128xf32>,
    return
  }
  func.func @transform_0(%arg0: i32, %arg1: i32) -> (i32, i32) {
    %c1_i32 = arith.constant 1 : i32
    %0 = arith.muli %arg0, %c1_i32 : i32
    %1 = arith.addi %0, %arg1 : i32
    %c0_i32 = arith.constant 0 : i32
    %2 = arith.minsi %1, %c0_i32 : i32
    %c0_i32_0 = arith.constant 0 : i32
    %c0_i32_1 = arith.constant 0 : i32
    return %2, %c0_i32_0 : i32, i32
  }
  func.func @transform_1(%arg0: i32, %arg1: i32) -> (i32, i32) {
    %c1_i32 = arith.constant 1 : i32
    %0 = arith.muli %arg0, %c1_i32 : i32
    %1 = arith.addi %0, %arg1 : i32
    %c0_i32 = arith.constant 0 : i32
    %2 = arith.minsi %1, %c0_i32 : i32
    %c0_i32_0 = arith.constant 0 : i32
    %c0_i32_1 = arith.constant 0 : i32
    return %2, %c0_i32_0 : i32, i32
  }
  func.func @transform_2(%arg0: i32, %arg1: i32) -> (i32, i32) {
    %c0_i32 = arith.constant 0 : i32
    %c0_i32_0 = arith.constant 0 : i32
    return %arg0, %c0_i32 : i32, i32
  }
  func.func @transform_3(%arg0: i32, %arg1: i32) -> (i32, i32) {
    %c0_i32 = arith.constant 0 : i32
    %c0_i32_0 = arith.constant 0 : i32
    return %arg0, %c0_i32 : i32, i32
  }
}

</mosaic_0001>

<llo_original>
// kernel: _forward.1
$region0: #{_forward.1}
  #allocation0 [shape = 'u32[]', space=smem, size = 0x4, offset = 0x4, fixed_abs, tag = 'smem constant byte address 0x4 - core index']
  #allocation1 [shape = 'u32[144,128]{1,0:T(1,128)}', space=vmem, size = 0x12000, scoped, tag = 'internal scratch']
  %s0 = inlined_call_operand.vmem [shape: f32[16,128], index: 0, kind: input, shape index: {}]
  %s1 = inlined_call_operand.vmem [shape: f32[16,128], index: 1, kind: input, shape index: {}]
  %s2 = inlined_call_operand.hbm [shape: f32[8,128], index: 2, kind: output, shape index: {0}]
  %s3 = inlined_call_operand.vmem [shape: f32[8,128], index: 3, kind: output, shape index: {1}]
  %4 = xla_tuple %s2, %s3
  %s5 = sld [smem:[#allocation0]]
  $region30: #{_forward.1} parent=0
    _
  %s7 = ssub.s32 1, %s5
  %s8 = scalar_select 0, %s7, %s5
  $region1: #{_forward.1} parent=0
    #allocation2 [shape = 'u8[4096]{0}', space=vmem, size = 0x1000, scoped, tag = 'output window, operand 0, single buffered']
    #allocation3 [shape = 's32[1]{0}', space=sflag, size = 0x4, scoped, tag = 'scoped memory for _forward.1']
    %9 = vsyncpa [#allocation3], 0
    // Predicated region
    $region2: #{_forward.1} parent=1 // pred_check
      _
    $region3: #{_forward.1} parent=1 // pred_check_branch
      %11 = sbr.rel (0) target = $region5
    $region4: #{_forward.1} parent=1 // pred_region
      %s12 = sadd.s32 0, 0
      %p13 = scmp.lt.s32.totalorder %s12, 0
      %s14 = scalar_select %p13, %s12, 0
      %s15 = smul.u32 2, %s14
      %p16 = scmp.lt.s32.totalorder %s15, 1
      %s17 = scalar_select %p16, %s15, 1
      %s18 = smul.addr %s17, 8
      %s19 = scalar_lea.vmem %s0, %s18
      %s20 = sadd.s32 0, 0
      %p21 = scmp.lt.s32.totalorder %s20, 0
      %s22 = scalar_select %p21, %s20, 0
      %s23 = smul.u32 2, %s22
    $region5: #{_forward.1} parent=1 // pred_fallthru
      _
    // Predicated region
    $region6: #{_forward.1} parent=1 // pred_check
      _
    $region7: #{_forward.1} parent=1 // pred_check_branch
      %25 = sbr.rel (0) target = $region9
    $region8: #{_forward.1} parent=1 // pred_region
      %s26 = sadd.s32 0, 0
      %p27 = scmp.lt.s32.totalorder %s26, 0
      %s28 = scalar_select %p27, %s26, 0
      %s29 = smul.u32 2, %s28
      %p30 = scmp.lt.s32.totalorder %s29, 1
      %s31 = scalar_select %p30, %s29, 1
      %s32 = smul.addr %s31, 8
      %s33 = scalar_lea.vmem %s1, %s32
      %s34 = sadd.s32 0, 0
      %p35 = scmp.lt.s32.totalorder %s34, 0
      %s36 = scalar_select %p35, %s34, 0
      %s37 = smul.u32 2, %s36
    $region9: #{_forward.1} parent=1 // pred_fallthru
      _
    %s38 = sadd.s32 0, 0
    %p39 = scmp.lt.s32.totalorder %s38, 0
    %s40 = scalar_select %p39, %s38, 0
    %s41 = smul.u32 2, %s40
    %p42 = scmp.lt.s32.totalorder %s41, 1
    %s43 = scalar_select %p42, %s41, 1
    %s44 = smul.addr %s43, 8
    %s45 = scalar_lea.vmem %s0, %s44
    %s46 = sadd.s32 0, 0
    %p47 = scmp.lt.s32.totalorder %s46, 0
    %s48 = scalar_select %p47, %s46, 0
    %s49 = smul.u32 2, %s48
    %p50 = scmp.lt.s32.totalorder %s49, 1
    %s51 = scalar_select %p50, %s49, 1
    %s52 = smul.addr %s51, 8
    %s53 = scalar_lea.vmem %s1, %s52
    %s54 = sadd.s32 0, 0
    %p55 = scmp.lt.s32.totalorder %s54, 0
    %s56 = scalar_select %p55, %s54, 0
    %s57 = smul.u32 2, %s56
    %p58 = scmp.lt.s32.totalorder %s57, 1
    %s59 = scalar_select %p58, %s57, 1
    %s60 = smul.addr %s59, 8
    %s61 = scalar_lea.vmem %s0, %s60
    %s62 = sadd.s32 0, 0
    %p63 = scmp.lt.s32.totalorder %s62, 0
    %s64 = scalar_select %p63, %s62, 0
    %s65 = smul.u32 2, %s64
    %s66 = sadd.s32 0, 0
    %p67 = scmp.lt.s32.totalorder %s66, 0
    %s68 = scalar_select %p67, %s66, 0
    %s69 = smul.u32 2, %s68
    %p70 = scmp.lt.s32.totalorder %s69, 1
    %s71 = scalar_select %p70, %s69, 1
    %s72 = smul.addr %s71, 8
    %s73 = scalar_lea.vmem %s1, %s72
    %s74 = sadd.s32 0, 0
    %p75 = scmp.lt.s32.totalorder %s74, 0
    %s76 = scalar_select %p75, %s74, 0
    %s77 = smul.u32 2, %s76
    %p78 = scmp.eq.s32.totalorder 0, 0
    // Predicated region
    $region10: #{_forward.1} parent=1 // pred_check
      %p79 = pneg %p78
    $region11: #{_forward.1} parent=1 // pred_check_branch
      %81 = sbr.rel (%p79) target = $region13
    $region12: #{_forward.1} parent=1 // pred_region
      %82 = vst [vmem:[#allocation2] sm:$0xff] 0.0
      %83 = vst [vmem:[%s3] sm:$0xff] 0.0
    $region13: #{_forward.1} parent=1 // pred_fallthru
      _
    %v84 = vld [vmem:[%s61] sm:$0xff]
    %v85 = vld [vmem:[%s61 + $0x8] sm:$0xff]
    %v86 = vld [vmem:[%s73] sm:$0xff]
    %v87 = vld [vmem:[%s73 + $0x8] sm:$0xff]
    %v88 = vsub.f32 %v84, %v86
    %v89 = vsub.f32 %v85, %v87
    %v90 = vmul.f32 %v88, %v88
    %v91 = vmul.f32 %v89, %v89
    %v92 = vadd.f32 %v90, %v91
    %v93 = vand.u32 2147483647, %v88
    %v94 = vand.u32 2147483647, %v89
    %v95 = vadd.f32 %v93, %v94
    %v96 = vadd.f32 %v92, 0.0
    %v97 = vadd.f32 %v95, 0.0
    %v98 = vld [vmem:[#allocation2] sm:$0xff]
    %v99 = vadd.f32 %v98, %v96
    %100 = vst [vmem:[#allocation2] sm:$0xff] %v99
    %v101 = vld [vmem:[%s3] sm:$0xff]
    %v102 = vadd.f32 %v101, %v97
    %103 = vst [vmem:[%s3] sm:$0xff] %v102
    // Predicated region
    $region14: #{_forward.1} parent=1 // pred_check
      _
    $region15: #{_forward.1} parent=1 // pred_check_branch
      %105 = sbr.rel (0) target = $region17
    $region16: #{_forward.1} parent=1 // pred_region
      %s107 = ssub.s32 128, 128
      %108 = vsyncadd [#allocation3], %s107
      %s110 = sshll.u32 [#allocation2], 4
      %s111 = int_to_ptr.vmem [resolvable:$true] %s110
      %113 = dma.vmem_to_hbm [thread:$0]  %s111, 128, %s2, [#allocation3]
    $region17: #{_forward.1} parent=1 // pred_fallthru
      _
    // Predicated region
    $region18: #{_forward.1} parent=1 // pred_check
      _
    $region19: #{_forward.1} parent=1 // pred_check_branch
      %115 = sbr.rel (0) target = $region21
    $region20: #{_forward.1} parent=1 // pred_region
      _
    $region21: #{_forward.1} parent=1 // pred_fallthru
      _
    // Predicated region
    $region22: #{_forward.1} parent=1 // pred_check
      _
    $region23: #{_forward.1} parent=1 // pred_check_branch
      %117 = sbr.rel (0) target = $region25
    $region24: #{_forward.1} parent=1 // pred_region
      %118 = dma.done [#allocation3], 128
    $region25: #{_forward.1} parent=1 // pred_fallthru
      _
    // Predicated region
    $region26: #{_forward.1} parent=1 // pred_check
      _
    $region27: #{_forward.1} parent=1 // pred_check_branch
      %120 = sbr.rel (0) target = $region29
    $region28: #{_forward.1} parent=1 // pred_region
      _
    $region29: #{_forward.1} parent=1 // pred_fallthru
      _
    %121 = vsyncpa [#allocation3], 1

</llo_original>
